<compile_context>
chip_gen: v5e
topology: v5e:2x2
jax: 0.10.0
libtpu: 0.0.40
codegen_flags: <defaults>
</compile_context>

<pallas_src>
import functools

import jax
import jax.numpy as jnp
from jax.experimental import pallas as pl
from jax.experimental.pallas import tpu as pltpu

CON_LOSS_T = 0.05


# ------------------------------ fused kernel ------------------------------- #

def _my_loss2_kernel(x_ref, lab_ref, xc_ref, inp_ref, xdc_ref, o_ref,
                     *, alpha, gamma, T):
    # ---------------- focal loss ----------------
    x = x_ref[...].astype(jnp.float32)                        # (n, C) logits
    lab = lab_ref[...]                                        # (n, 1) int32
    n, C = x.shape

    m = jnp.max(x, axis=1, keepdims=True)
    z = x - m
    lse = jnp.log(jnp.sum(jnp.exp(z), axis=1, keepdims=True))
    logp = z - lse                                            # log-softmax
    p = jnp.exp(logp)

    iota_c = jax.lax.broadcasted_iota(jnp.int32, (n, C), 1)
    oh = iota_c == lab                                        # (n, C) bool one-hot
    oh_f = oh.astype(jnp.float32)
    p_t = jnp.sum(oh_f * p, axis=1, keepdims=True)            # (n, 1)
    logp_t = jnp.sum(oh_f * logp, axis=1, keepdims=True)      # (n, 1)

    # per-class alpha "gather" as C scalar selects (alpha is a static tuple)
    alpha_t = jnp.full((n, 1), float(alpha[0]), jnp.float32)
    for c in range(1, C):
        alpha_t = jnp.where(lab == c, float(alpha[c]), alpha_t)

    q = 1.0 - p_t
    focal_w = q * q if gamma == 2 else q ** gamma             # explicit square
    focal_rows = -alpha_t * focal_w * logp_t                  # (n, 1)
    focal = jnp.sum(focal_rows, axis=0, keepdims=True) / n    # (1, 1)

    # ---------------- MSE(inputs, XDC) ----------------
    a = inp_ref[...].astype(jnp.float32)                      # (n, F)
    b = xdc_ref[...].astype(jnp.float32)
    d = a - b
    mse_rows = jnp.sum(d * d, axis=1, keepdims=True)          # (n, 1)
    mse = (jnp.sum(mse_rows, axis=0, keepdims=True)
           / (a.shape[0] * a.shape[1]))                       # (1, 1)

    # ---------------- supervised contrastive loss ----------------
    xc = xc_ref[...].astype(jnp.float32)                      # (n, D)
    # row-normalize first: gram of normalized rows == cosine similarity
    inv_norm = jax.lax.rsqrt(
        jnp.maximum(jnp.sum(xc * xc, axis=1, keepdims=True), 1e-16))
    xn = xc * inv_norm                                        # (n, D)
    sim = jax.lax.dot_general(xn, xn, (((1,), (1,)), ((), ())),
                              preferred_element_type=jnp.float32)   # (n, n)

    # same-label mask from the already-computed one-hot (no extra label input)
    same_f = jax.lax.dot_general(oh_f, oh_f, (((1,), (1,)), ((), ())),
                                 preferred_element_type=jnp.float32)
    same = same_f > 0.5                                       # (n, n) bool

    ri = jax.lax.broadcasted_iota(jnp.int32, (n, n), 0)
    ci = jax.lax.broadcasted_iota(jnp.int32, (n, n), 1)
    pos = jnp.logical_and(same, ri != ci)                     # positive pairs

    sim_T = sim * (1.0 / T)
    S = jnp.exp(sim_T)                                        # exp(sim/T), f32
    # negatives (different label) sum per row
    nss = jnp.sum(jnp.where(same, 0.0, S), axis=1, keepdims=True)   # (n, 1)
    # -log(sim_pos / (sim_pos + nss)) = log(S + nss) - sim/T on positive pairs
    nll = jnp.where(pos, jnp.log(S + nss) - sim_T, 0.0)       # (n, n), finite
    con_rows = jnp.sum(nll, axis=1, keepdims=True)            # (n, 1)
    con = jnp.sum(con_rows, axis=0, keepdims=True) / (2.0 * n)

    # ---------------- weighted sum ----------------
    o_ref[...] = focal + 10.0 * mse + 0.1 * con


# -------------------------------- wrapper ----------------------------------- #

def my_loss2_forward(X, target, XC, XDC, inputs, alpha, gamma=2, T=CON_LOSS_T):
    """Equivalent of my_loss2.forward(X, target, XC, XDC, inputs).

    `alpha` must be a static per-class weight sequence (baked into the kernel).
    """
    n, C = X.shape
    alpha = tuple(float(a) for a in alpha)
    assert len(alpha) == C

    lab_col = target.reshape(n, 1)
    if lab_col.dtype != jnp.int32:
        lab_col = lab_col.astype(jnp.int32)

    def vmem_spec():
        return pl.BlockSpec(memory_space=pltpu.MemorySpace.VMEM)

    out = pl.pallas_call(
        functools.partial(_my_loss2_kernel, alpha=alpha, gamma=gamma, T=T),
        out_shape=jax.ShapeDtypeStruct((1, 1), jnp.float32),
        # grid-less: whole arrays land in VMEM once, no pipeline bookkeeping.
        in_specs=[vmem_spec() for _ in range(5)],
        out_specs=vmem_spec(),
    )(X, lab_col, XC, inputs, XDC)
    return out[0, 0]


# ------------------------------- reference ---------------------------------- #

def _ref_loss(X, target, XC, XDC, inputs, alpha, gamma, T):
    n = X.shape[0]
    logp = jax.nn.log_softmax(X, axis=1)
    p = jnp.exp(logp)
    pt = p[jnp.arange(n), target]
    logpt = logp[jnp.arange(n), target]
    a = alpha[target]
    fl = jnp.mean(-a * (1.0 - pt) ** gamma * logpt)
    mse = jnp.mean((inputs - XDC) ** 2)
    xn = XC / jnp.maximum(jnp.linalg.norm(XC, axis=1, keepdims=True), 1e-8)
    sim = xn @ xn.T
    mask = (target[:, None] == target[None, :]).astype(jnp.float32)
    eye = jnp.eye(n, dtype=jnp.float32)
    S = jnp.exp(sim / T) * (1.0 - eye)
    sim_pos = mask * S
    nss = jnp.sum(S - sim_pos, axis=1, keepdims=True)
    ratio = sim_pos / (sim_pos + nss)
    L = (1.0 - mask) + ratio + eye
    cl = jnp.sum(-jnp.log(L)) / (2.0 * n)
    return fl + 10.0 * mse + 0.1 * cl


# --------------------------------- main -------------------------------------- #

if __name__ == "__main__":
    key = jax.random.PRNGKey(0)
    k1, k2, k3, k4, k5 = jax.random.split(key, 5)

    n, classNum, D, F = 8, 3, 32, 32
    each_num_wei = (0.2, 0.3, 0.5)        # per-class alpha (static)
    gamma = 2

    X = jax.random.normal(k1, (n, classNum), dtype=jnp.float32)        # logits
    target = jax.random.randint(k2, (n,), 0, classNum, dtype=jnp.int32)
    XC = jax.random.normal(k3, (n, D), dtype=jnp.float32)              # reps
    XDC = jax.random.normal(k4, (n, F), dtype=jnp.float32)             # recon
    inputs = jax.random.normal(k5, (n, F), dtype=jnp.float32)

    loss = my_loss2_forward(X, target, XC, XDC, inputs, each_num_wei,
                            gamma=gamma, T=CON_LOSS_T)
    loss = jax.block_until_ready(loss)

    alpha_arr = jnp.array(each_num_wei, dtype=jnp.float32)
    ref = _ref_loss(X, target, XC, XDC, inputs, alpha_arr, gamma, CON_LOSS_T)
    ref = jax.block_until_ready(ref)

    assert jnp.isfinite(loss), "loss is not finite"
    assert jnp.allclose(loss, ref, rtol=2e-3, atol=1e-4), (loss, ref)
    print("KERNEL_OK")
</pallas_src>

<mosaic_0001>
module attributes {stable_mosaic.version = 11 : i64} {
  func.func @_my_loss2_kernel(%arg0: memref<8x3xf32, #tpu.memory_space<vmem>>, %arg1: memref<8x1xi32, #tpu.memory_space<vmem>>, %arg2: memref<8x32xf32, #tpu.memory_space<vmem>>, %arg3: memref<8x32xf32, #tpu.memory_space<vmem>>, %arg4: memref<8x32xf32, #tpu.memory_space<vmem>>, %arg5: memref<1x1xf32, #tpu.memory_space<vmem>>) attributes {dimension_semantics = [], scalar_prefetch = 0 : i64, scratch_operands = 0 : i64, tpu.core_type = #tpu.core_type<tc>} {
    %c0 = arith.constant 0 : index
    %c0_0 = arith.constant 0 : index
    %0 = vector.load %arg0[%c0, %c0_0] : memref<8x3xf32, #tpu.memory_space<vmem>>, vector<8x3xf32>
    %c0_1 = arith.constant 0 : index
    %c0_2 = arith.constant 0 : index
    %1 = vector.load %arg1[%c0_1, %c0_2] : memref<8x1xi32, #tpu.memory_space<vmem>>, vector<8x1xi32>
    %cst = arith.constant dense<0xFF800000> : vector<8xf32>
    %2 = vector.multi_reduction <maximumf>, %0, %cst [1] : vector<8x3xf32> to vector<8xf32>
    %3 = vector.shape_cast %2 : vector<8xf32> to vector<8x1xf32>
    %4 = vector.broadcast %3 : vector<8x1xf32> to vector<8x3xf32>
    %5 = arith.subf %0, %4 : vector<8x3xf32>
    %6 = math.exp %5 : vector<8x3xf32>
    %cst_3 = arith.constant dense<0.000000e+00> : vector<8xf32>
    %7 = vector.multi_reduction <add>, %6, %cst_3 [1] : vector<8x3xf32> to vector<8xf32>
    %8 = vector.shape_cast %7 : vector<8xf32> to vector<8x1xf32>
    %9 = math.log %8 : vector<8x1xf32>
    %10 = vector.broadcast %9 : vector<8x1xf32> to vector<8x3xf32>
    %11 = arith.subf %5, %10 : vector<8x3xf32>
    %12 = math.exp %11 : vector<8x3xf32>
    %13 = tpu.iota {dimensions = array<i32: 1>} : vector<8x3xi32>
    %14 = vector.broadcast %1 : vector<8x1xi32> to vector<8x3xi32>
    %15 = arith.cmpi eq, %13, %14 : vector<8x3xi32>
    %16 = arith.extui %15 : vector<8x3xi1> to vector<8x3xi32>
    %17 = arith.sitofp %16 : vector<8x3xi32> to vector<8x3xf32>
    %18 = arith.mulf %17, %12 : vector<8x3xf32>
    %cst_4 = arith.constant dense<0.000000e+00> : vector<8xf32>
    %19 = vector.multi_reduction <add>, %18, %cst_4 [1] : vector<8x3xf32> to vector<8xf32>
    %20 = vector.shape_cast %19 : vector<8xf32> to vector<8x1xf32>
    %21 = arith.mulf %17, %11 : vector<8x3xf32>
    %cst_5 = arith.constant dense<0.000000e+00> : vector<8xf32>
    %22 = vector.multi_reduction <add>, %21, %cst_5 [1] : vector<8x3xf32> to vector<8xf32>
    %23 = vector.shape_cast %22 : vector<8xf32> to vector<8x1xf32>
    %cst_6 = arith.constant 2.000000e-01 : f32
    %24 = vector.broadcast %cst_6 : f32 to vector<8x1xf32>
    %c1_i32 = arith.constant 1 : i32
    %25 = vector.broadcast %c1_i32 : i32 to vector<8x1xi32>
    %26 = arith.cmpi eq, %1, %25 : vector<8x1xi32>
    %cst_7 = arith.constant 3.000000e-01 : f32
    %27 = vector.broadcast %cst_7 : f32 to vector<8x1xf32>
    %28 = arith.select %26, %27, %24 : vector<8x1xi1>, vector<8x1xf32>
    %c2_i32 = arith.constant 2 : i32
    %29 = vector.broadcast %c2_i32 : i32 to vector<8x1xi32>
    %30 = arith.cmpi eq, %1, %29 : vector<8x1xi32>
    %cst_8 = arith.constant 5.000000e-01 : f32
    %31 = vector.broadcast %cst_8 : f32 to vector<8x1xf32>
    %32 = arith.select %30, %31, %28 : vector<8x1xi1>, vector<8x1xf32>
    %cst_9 = arith.constant 1.000000e+00 : f32
    %33 = vector.broadcast %cst_9 : f32 to vector<8x1xf32>
    %34 = arith.subf %33, %20 : vector<8x1xf32>
    %35 = arith.mulf %34, %34 : vector<8x1xf32>
    %cst_10 = arith.constant 0.000000e+00 : f32
    %36 = vector.broadcast %cst_10 : f32 to vector<8x1xf32>
    %37 = arith.subf %36, %32 : vector<8x1xf32>
    %38 = arith.mulf %37, %35 : vector<8x1xf32>
    %39 = arith.mulf %38, %23 : vector<8x1xf32>
    %cst_11 = arith.constant dense<0.000000e+00> : vector<1xf32>
    %40 = vector.multi_reduction <add>, %39, %cst_11 [0] : vector<8x1xf32> to vector<1xf32>
    %41 = vector.shape_cast %40 : vector<1xf32> to vector<1x1xf32>
    %cst_12 = arith.constant 8.000000e+00 : f32
    %42 = vector.broadcast %cst_12 : f32 to vector<1x1xf32>
    %43 = arith.divf %41, %42 : vector<1x1xf32>
    %c0_13 = arith.constant 0 : index
    %c0_14 = arith.constant 0 : index
    %44 = vector.load %arg3[%c0_13, %c0_14] : memref<8x32xf32, #tpu.memory_space<vmem>>, vector<8x32xf32>
    %c0_15 = arith.constant 0 : index
    %c0_16 = arith.constant 0 : index
    %45 = vector.load %arg4[%c0_15, %c0_16] : memref<8x32xf32, #tpu.memory_space<vmem>>, vector<8x32xf32>
    %46 = arith.subf %44, %45 : vector<8x32xf32>
    %47 = arith.mulf %46, %46 : vector<8x32xf32>
    %cst_17 = arith.constant dense<0.000000e+00> : vector<8xf32>
    %48 = vector.multi_reduction <add>, %47, %cst_17 [1] : vector<8x32xf32> to vector<8xf32>
    %49 = vector.shape_cast %48 : vector<8xf32> to vector<8x1xf32>
    %cst_18 = arith.constant dense<0.000000e+00> : vector<1xf32>
    %50 = vector.multi_reduction <add>, %49, %cst_18 [0] : vector<8x1xf32> to vector<1xf32>
    %51 = vector.shape_cast %50 : vector<1xf32> to vector<1x1xf32>
    %cst_19 = arith.constant 2.560000e+02 : f32
    %52 = vector.broadcast %cst_19 : f32 to vector<1x1xf32>
    %53 = arith.divf %51, %52 : vector<1x1xf32>
    %c0_20 = arith.constant 0 : index
    %c0_21 = arith.constant 0 : index
    %54 = vector.load %arg2[%c0_20, %c0_21] : memref<8x32xf32, #tpu.memory_space<vmem>>, vector<8x32xf32>
    %55 = arith.mulf %54, %54 : vector<8x32xf32>
    %cst_22 = arith.constant dense<0.000000e+00> : vector<8xf32>
    %56 = vector.multi_reduction <add>, %55, %cst_22 [1] : vector<8x32xf32> to vector<8xf32>
    %57 = vector.shape_cast %56 : vector<8xf32> to vector<8x1xf32>
    %cst_23 = arith.constant 1.000000e-16 : f32
    %58 = vector.broadcast %cst_23 : f32 to vector<8x1xf32>
    %59 = arith.maximumf %57, %58 : vector<8x1xf32>
    %60 = math.rsqrt %59 : vector<8x1xf32>
    %61 = vector.broadcast %60 : vector<8x1xf32> to vector<8x32xf32>
    %62 = arith.mulf %54, %61 : vector<8x32xf32>
    %cst_24 = arith.constant dense<0.000000e+00> : vector<8x8xf32>
    %63 = tpu.matmul %62, %62, %cst_24 {dimension_numbers = #tpu.dot_dimension_numbers<[1], [1], [0], [0], [0, 0, 1, 0], [], []>} : vector<8x32xf32>, vector<8x32xf32>, vector<8x8xf32> -> vector<8x8xf32>
    %cst_25 = arith.constant dense<0.000000e+00> : vector<8x8xf32>
    %64 = tpu.matmul %17, %17, %cst_25 {dimension_numbers = #tpu.dot_dimension_numbers<[1], [1], [0], [0], [0, 0, 1, 0], [], []>} : vector<8x3xf32>, vector<8x3xf32>, vector<8x8xf32> -> vector<8x8xf32>
    %cst_26 = arith.constant 5.000000e-01 : f32
    %65 = vector.broadcast %cst_26 : f32 to vector<8x8xf32>
    %66 = arith.cmpf ogt, %64, %65 : vector<8x8xf32>
    %67 = tpu.iota {dimensions = array<i32: 0>} : vector<8x8xi32>
    %68 = tpu.iota {dimensions = array<i32: 1>} : vector<8x8xi32>
    %69 = arith.cmpi ne, %67, %68 : vector<8x8xi32>
    %70 = arith.andi %66, %69 : vector<8x8xi1>
    %cst_27 = arith.constant 2.000000e+01 : f32
    %71 = vector.broadcast %cst_27 : f32 to vector<8x8xf32>
    %72 = arith.mulf %63, %71 : vector<8x8xf32>
    %73 = math.exp %72 : vector<8x8xf32>
    %cst_28 = arith.constant 0.000000e+00 : f32
    %74 = vector.broadcast %cst_28 : f32 to vector<8x8xf32>
    %75 = arith.select %66, %74, %73 : vector<8x8xi1>, vector<8x8xf32>
    %cst_29 = arith.constant dense<0.000000e+00> : vector<8xf32>
    %76 = vector.multi_reduction <add>, %75, %cst_29 [1] : vector<8x8xf32> to vector<8xf32>
    %77 = vector.shape_cast %76 : vector<8xf32> to vector<8x1xf32>
    %78 = vector.broadcast %77 : vector<8x1xf32> to vector<8x8xf32>
    %79 = arith.addf %73, %78 : vector<8x8xf32>
    %80 = math.log %79 : vector<8x8xf32>
    %81 = arith.subf %80, %72 : vector<8x8xf32>
    %cst_30 = arith.constant 0.000000e+00 : f32
    %82 = vector.broadcast %cst_30 : f32 to vector<8x8xf32>
    %83 = arith.select %70, %81, %82 : vector<8x8xi1>, vector<8x8xf32>
    %cst_31 = arith.constant dense<0.000000e+00> : vector<8xf32>
    %84 = vector.multi_reduction <add>, %83, %cst_31 [1] : vector<8x8xf32> to vector<8xf32>
    %85 = vector.shape_cast %84 : vector<8xf32> to vector<8x1xf32>
    %cst_32 = arith.constant dense<0.000000e+00> : vector<1xf32>
    %86 = vector.multi_reduction <add>, %85, %cst_32 [0] : vector<8x1xf32> to vector<1xf32>
    %87 = vector.shape_cast %86 : vector<1xf32> to vector<1x1xf32>
    %cst_33 = arith.constant 1.600000e+01 : f32
    %88 = vector.broadcast %cst_33 : f32 to vector<1x1xf32>
    %89 = arith.divf %87, %88 : vector<1x1xf32>
    %cst_34 = arith.constant 1.000000e+01 : f32
    %90 = vector.broadcast %cst_34 : f32 to vector<1x1xf32>
    %91 = arith.mulf %90, %53 : vector<1x1xf32>
    %92 = arith.addf %43, %91 : vector<1x1xf32>
    %cst_35 = arith.constant 1.000000e-01 : f32
    %93 = vector.broadcast %cst_35 : f32 to vector<1x1xf32>
    %94 = arith.mulf %93, %89 : vector<1x1xf32>
    %95 = arith.addf %92, %94 : vector<1x1xf32>
    %c0_36 = arith.constant 0 : index
    %c0_37 = arith.constant 0 : index
    %96 = vector.load %arg5[%c0_36, %c0_37] : memref<1x1xf32, #tpu.memory_space<vmem>>, vector<1x1xf32>
    tpu.vector_store %arg5[%c0_36, %c0_37], %95 {strides = array<i32>} : memref<1x1xf32, #tpu.memory_space<vmem>>, vector<1x1xf32>,
    return
  }
}

</mosaic_0001>

<llo_original>
// kernel: tpu_custom_call.1
$region0: #{tpu_custom_call.1}
  #allocation0 [shape = 'u32[]', space=smem, size = 0x4, offset = 0x4, fixed_abs, tag = 'smem constant byte address 0x4 - core index']
  #allocation1 [shape = 'u32[72,128]{1,0:T(1,128)}', space=vmem, size = 0x9000, scoped, tag = 'internal scratch']
  %s0 = inlined_call_operand.vmem [shape: f32[8,3], index: 0, kind: input, shape index: {}]
  %s1 = inlined_call_operand.vmem [shape: s32[8,1], index: 1, kind: input, shape index: {}]
  %s2 = inlined_call_operand.vmem [shape: f32[8,32], index: 2, kind: input, shape index: {}]
  %s3 = inlined_call_operand.vmem [shape: f32[8,32], index: 3, kind: input, shape index: {}]
  %s4 = inlined_call_operand.hbm [shape: f32[8,32], index: 4, kind: input, shape index: {}]
  %s5 = inlined_call_operand.hbm [shape: f32[1,1], index: 5, kind: output, shape index: {}]
  %s6 = sld [smem:[#allocation0]]
  $region34: #{tpu_custom_call.1} parent=0
    _
  %s8 = ssub.s32 1, %s6
  %s9 = scalar_select 0, %s8, %s6
  $region1: #{tpu_custom_call.1} parent=0
    #allocation2 [shape = 'u8[4096]{0}', space=vmem, size = 0x1000, scoped, tag = 'input window, operand 4, single buffered']
    #allocation3 [shape = 's32[1]{0}', space=sflag, size = 0x4, scoped, tag = 'scoped memory for tpu_custom_call.1']
    #allocation4 [shape = 's32[1]{0}', space=sflag, size = 0x4, scoped, tag = 'scoped memory for tpu_custom_call.1']
    #allocation5 [shape = 'u8[512]{0}', space=vmem, size = 0x400, scoped, tag = 'output window, operand 0, single buffered']
    %10 = vsyncpa [#allocation3], 0
    %11 = vsyncpa [#allocation4], 0
    // Predicated region
    $region2: #{tpu_custom_call.1} parent=1 // pred_check
      _
    $region3: #{tpu_custom_call.1} parent=1 // pred_check_branch
      %13 = sbr.rel (0) target = $region5
    $region4: #{tpu_custom_call.1} parent=1 // pred_region
      _
    $region5: #{tpu_custom_call.1} parent=1 // pred_fallthru
      _
    // Predicated region
    $region6: #{tpu_custom_call.1} parent=1 // pred_check
      _
    $region7: #{tpu_custom_call.1} parent=1 // pred_check_branch
      %15 = sbr.rel (0) target = $region9
    $region8: #{tpu_custom_call.1} parent=1 // pred_region
      _
    $region9: #{tpu_custom_call.1} parent=1 // pred_fallthru
      _
    // Predicated region
    $region10: #{tpu_custom_call.1} parent=1 // pred_check
      _
    $region11: #{tpu_custom_call.1} parent=1 // pred_check_branch
      %17 = sbr.rel (0) target = $region13
    $region12: #{tpu_custom_call.1} parent=1 // pred_region
      _
    $region13: #{tpu_custom_call.1} parent=1 // pred_fallthru
      _
    // Predicated region
    $region14: #{tpu_custom_call.1} parent=1 // pred_check
      _
    $region15: #{tpu_custom_call.1} parent=1 // pred_check_branch
      %19 = sbr.rel (0) target = $region17
    $region16: #{tpu_custom_call.1} parent=1 // pred_region
      _
    $region17: #{tpu_custom_call.1} parent=1 // pred_fallthru
      _
    // Predicated region
    $region18: #{tpu_custom_call.1} parent=1 // pred_check
      _
    $region19: #{tpu_custom_call.1} parent=1 // pred_check_branch
      %21 = sbr.rel (0) target = $region21
    $region20: #{tpu_custom_call.1} parent=1 // pred_region
      %23 = vsyncadd [#allocation3], 0
      %s25 = sshll.u32 %s4, 4
      %s26 = int_to_ptr.hbm [resolvable:$true] %s25
      %s27 = sshll.u32 [#allocation2], 4
      %s28 = int_to_ptr.vmem [resolvable:$true] %s27
      %30 = dma.hbm_to_vmem [thread:$0]  %s26, 128, %s28, [#allocation3]
    $region21: #{tpu_custom_call.1} parent=1 // pred_fallthru
      _
    // Predicated region
    $region22: #{tpu_custom_call.1} parent=1 // pred_check
      _
    $region23: #{tpu_custom_call.1} parent=1 // pred_check_branch
      %32 = sbr.rel (0) target = $region25
    $region24: #{tpu_custom_call.1} parent=1 // pred_region
      %34 = dma.done [#allocation3], 128
    $region25: #{tpu_custom_call.1} parent=1 // pred_fallthru
      _
    %v35 = vld [vmem:[%s0] sm:$0xff]
    %v36 = vld [vmem:[%s1] sm:$0xff]
    %vm37 = vcmask 23552
    %v38 = vsel %vm37, %v35, -inf
    %39 = vmax.xlane.f32.xlu0 %v38
    %v40 = vpop.xlane.xlu0 %39
    %v41 = vsub.f32 %v35, %v40
    %v42 = vmul.f32 %v41, 1.442695
    %v43 = vpow.pop %v42
    %v44 = vsel %vm37, %v43, 0.0
    %45 = vadd.xlane.f32.xlu0 %v44
    %v46 = vpop.xlane.xlu0 %45
    %v47 = vlog2.pop %v46
    %v48 = vmul.f32 %v47, 0.6931472
    %v49 = vsub.f32 %v41, %v48
    %v50 = vmul.f32 %v49, 1.442695
    %v51 = vpow.pop %v50
    %v52 = vlaneseq
    %v53 = vand.u32 %v52, 127
    %54 = vset.pattern.permute.xlu0 0
    %55 = vperm.xlu0 %54, %v36
    %v56 = vpop.permute.xlu0 %55
    %vm57 = vcmp.eq.s32.totalorder %v53, %v56
    %v58 = vsel %vm57, 1, 0
    %v59 = vcvt.s32.f32 %v58
    %v60 = vmul.f32 %v59, %v51
    %v61 = vsel %vm37, %v60, 0.0
    %62 = vadd.xlane.f32.xlu0 %v61
    %v63 = vpop.xlane.xlu0 %62
    %v64 = vmul.f32 %v59, %v49
    %v65 = vsel %vm37, %v64, 0.0
    %66 = vadd.xlane.f32.xlu0 %v65
    %v67 = vpop.xlane.xlu0 %66
    %vm68 = vcmp.eq.s32.totalorder %v36, 1
    %v69 = vsel %vm68, 0.3, 0.2
    %vm70 = vcmp.eq.s32.totalorder %v36, 2
    %v71 = vsel %vm70, 0.5, %v69
    %v72 = vsub.f32 1.0, %v63
    %v73 = vmul.f32 %v72, %v72
    %v74 = vsub.f32 0.0, %v71
    %v75 = vmul.f32 %v74, %v73
    %v76 = vmul.f32 %v75, %v67
    %vm77 = vcmask 7168
    %v78 = vsel %vm77, %v76, 0.0
    %v79 = vrot.slane %v78, 4
    %v80 = vadd.f32 %v78, %v79
    %v81 = vrot.slane %v80, 2
    %v82 = vadd.f32 %v80, %v81
    %v83 = vrot.slane %v82, 1
    %v84 = vadd.f32 %v82, %v83
    %v85 = vrcp.pop 8.0
    %v86 = vmul.f32 8.0, %v85
    %v87 = vsub.f32 1.0, %v86
    %v88 = vmul.f32 %v85, %v87
    %v89 = vadd.f32 %v85, %v88
    %vm90 = vweird.f32 %v85
    %v91 = vsel %vm90, %v85, %v89
    %v92 = vmul.f32 %v84, %v91
    %v93 = vld [vmem:[%s3] sm:$0xff]
    %v94 = vld [vmem:[#allocation2] sm:$0xff]
    %v95 = vsub.f32 %v93, %v94
    %v96 = vmul.f32 %v95, %v95
    %vm97 = vcmask 261120
    %v98 = vsel %vm97, %v96, 0.0
    %99 = vadd.xlane.f32.xlu0 %v98
    %v100 = vpop.xlane.xlu0 %99
    %v101 = vrot.slane %v100, 4
    %v102 = vadd.f32 %v100, %v101
    %v103 = vrot.slane %v102, 2
    %v104 = vadd.f32 %v102, %v103
    %v105 = vrot.slane %v104, 1
    %v106 = vadd.f32 %v104, %v105
    %v107 = vrcp.pop 256.0
    %v108 = vmul.f32 256.0, %v107
    %v109 = vsub.f32 1.0, %v108
    %v110 = vmul.f32 %v107, %v109
    %v111 = vadd.f32 %v107, %v110
    %vm112 = vweird.f32 %v107
    %v113 = vsel %vm112, %v107, %v111
    %v114 = vmul.f32 %v106, %v113
    %v115 = vld [vmem:[%s2] sm:$0xff]
    %v116 = vmul.f32 %v115, %v115
    %v117 = vsel %vm97, %v116, 0.0
    %118 = vadd.xlane.f32.xlu0 %v117
    %v119 = vpop.xlane.xlu0 %118
    %v120 = vmax.f32 %v119, 1e-16
    %v121 = vrsqrt.pop %v120
    %v122 = vmul.f32 %v121, %v120
    %v123 = vmul.f32 %v122, %v121
    %v124 = vmul.f32 0.5, %v123
    %v125 = vsub.f32 1.5, %v124
    %v126 = vmul.f32 %v121, %v125
    %vm127 = vweird.f32 %v120
    %vm128 = vweird.f32 %v121
    %vm129 = vmor %vm127, %vm128
    %v130 = vsel %vm129, %v121, %v126
    %v131 = vmul.f32 %v115, %v130
    %v133 = vsel %vm97, %v131, 0
    %135 = vmatpush.xpose.msra.mxu0 0.0
    %136 = vmatpush.xpose.msra.mxu0 0.0
    %137 = vmatpush.xpose.msra.mxu0 0.0
    %138 = vmatpush.xpose.msra.mxu0 0.0
    %139 = vmatpush.xpose.msra.mxu0 0.0
    %140 = vmatpush.xpose.msra.mxu0 0.0
    %141 = vmatpush.xpose.msra.mxu0 0.0
    %142 = vmatpush.xpose.msra.mxu0 0.0
    %143 = vmatpush.xpose.msra.mxu0 0.0
    %144 = vmatpush.xpose.msra.mxu0 0.0
    %145 = vmatpush.xpose.msra.mxu0 0.0
    %146 = vmatpush.xpose.msra.mxu0 0.0
    %147 = vmatpush.xpose.msra.mxu0 0.0
    %148 = vmatpush.xpose.msra.mxu0 0.0
    %149 = vmatpush.xpose.msra.mxu0 0.0
    %150 = vmatpush.xpose.msra.mxu0 %v133
    %151 = vmatmul.f32.gmra.mxu0 %v133
    %v152 = vpop.f32.mrf.mxu0
    %v153 = vadd.f32 0.0, %v152
    %154 = vdwg.mxu0
    %v156 = vsel %vm37, %v59, 0
    %158 = vmatpush.xpose.msra.mxu0 0.0
    %159 = vmatpush.xpose.msra.mxu0 0.0
    %160 = vmatpush.xpose.msra.mxu0 0.0
    %161 = vmatpush.xpose.msra.mxu0 0.0
    %162 = vmatpush.xpose.msra.mxu0 0.0
    %163 = vmatpush.xpose.msra.mxu0 0.0
    %164 = vmatpush.xpose.msra.mxu0 0.0
    %165 = vmatpush.xpose.msra.mxu0 0.0
    %166 = vmatpush.xpose.msra.mxu0 0.0
    %167 = vmatpush.xpose.msra.mxu0 0.0
    %168 = vmatpush.xpose.msra.mxu0 0.0
    %169 = vmatpush.xpose.msra.mxu0 0.0
    %170 = vmatpush.xpose.msra.mxu0 0.0
    %171 = vmatpush.xpose.msra.mxu0 0.0
    %172 = vmatpush.xpose.msra.mxu0 0.0
    %173 = vmatpush.xpose.msra.mxu0 %v156
    %174 = vmatmul.f32.gmra.mxu0 %v156
    %v175 = vpop.f32.mrf.mxu0
    %v176 = vadd.f32 0.0, %v175
    %177 = vdwg.mxu0
    %vm178 = vcmp.gt.f32.partialorder %v176, 0.5
    %v179 = vlaneseq
    %v180 = vshrl.u32 %v179, 7
    %vm181 = vcmp.ne.s32.totalorder %v180, %v53
    %vm182 = vmand %vm178, %vm181
    %v183 = vmul.f32 %v153, 20.0
    %v184 = vmul.f32 %v183, 1.442695
    %v185 = vpow.pop %v184
    %v186 = vsel %vm178, 0.0, %v185
    %vm187 = vcmask 64512
    %v188 = vsel %vm187, %v186, 0.0
    %189 = vadd.xlane.f32.xlu0 %v188
    %v190 = vpop.xlane.xlu0 %189
    %v191 = vadd.f32 %v185, %v190
    %v192 = vlog2.pop %v191
    %v193 = vmul.f32 %v192, 0.6931472
    %v194 = vsub.f32 %v193, %v183
    %v195 = vsel %vm182, %v194, 0.0
    %v196 = vsel %vm187, %v195, 0.0
    %197 = vadd.xlane.f32.xlu0 %v196
    %v198 = vpop.xlane.xlu0 %197
    %v199 = vrot.slane %v198, 4
    %v200 = vadd.f32 %v198, %v199
    %v201 = vrot.slane %v200, 2
    %v202 = vadd.f32 %v200, %v201
    %v203 = vrot.slane %v202, 1
    %v204 = vadd.f32 %v202, %v203
    %v205 = vrcp.pop 16.0
    %v206 = vmul.f32 16.0, %v205
    %v207 = vsub.f32 1.0, %v206
    %v208 = vmul.f32 %v205, %v207
    %v209 = vadd.f32 %v205, %v208
    %vm210 = vweird.f32 %v205
    %v211 = vsel %vm210, %v205, %v209
    %v212 = vmul.f32 %v204, %v211
    %v213 = vmul.f32 %v114, 10.0
    %v214 = vadd.f32 %v92, %v213
    %v215 = vmul.f32 %v212, 0.1
    %v216 = vadd.f32 %v214, %v215
    %vm217 = vcmask 0
    %218 = vst.msk [vmem:[#allocation5] sm:$0x1] %vm217, %v216
    // Predicated region
    $region26: #{tpu_custom_call.1} parent=1 // pred_check
      _
    $region27: #{tpu_custom_call.1} parent=1 // pred_check_branch
      %220 = sbr.rel (0) target = $region29
    $region28: #{tpu_custom_call.1} parent=1 // pred_region
      %222 = vsyncadd [#allocation4], 0
      %s224 = sshll.u32 [#allocation5], 4
      %s225 = int_to_ptr.vmem [resolvable:$true] %s224
      %s226 = sshll.u32 %s5, 4
      %s227 = int_to_ptr.hbm [resolvable:$true] %s226
      %229 = dma.vmem_to_hbm [thread:$0]  %s225, 16, %s227, [#allocation4]
    $region29: #{tpu_custom_call.1} parent=1 // pred_fallthru
      _
    // Predicated region
    $region30: #{tpu_custom_call.1} parent=1 // pred_check
      _
    $region31: #{tpu_custom_call.1} parent=1 // pred_check_branch
      %231 = sbr.rel (0) target = $region33
    $region32: #{tpu_custom_call.1} parent=1 // pred_region
      %233 = dma.done [#allocation4], 16
    $region33: #{tpu_custom_call.1} parent=1 // pred_fallthru
      _
    %234 = vsyncpa [#allocation3], 1
    %235 = vsyncpa [#allocation4], 1

</llo_original>
